<compile_context>
chip_gen: v7x
topology: tpu7x:2x2x1
jax: 0.10.0
libtpu: 0.0.40
codegen_flags: <defaults>
</compile_context>

<pallas_src>
import jax
import jax.numpy as jnp
from jax.experimental import pallas as pl
from jax.experimental.pallas import tpu as pltpu


def _linear_kernel(x_ref, w_ref, o_ref):
    # out_tile = x_tile @ W_block ; W_block is a tiny resident square block.
    o_ref[...] = jnp.dot(
        x_ref[...], w_ref[...], preferred_element_type=jnp.float32
    ).astype(o_ref.dtype)


def lora_forward(x, A, B, *, tile_m=1024):
    """Forward of LoraLayer: out = x @ (A @ B).T with x: (batch, seq, rank)."""
    batch, seq, rank = x.shape
    head_dim = A.shape[1]
    assert A.shape == (rank, head_dim) and B.shape == (head_dim, rank)

    # matrix = A @ B is an init-time constant in the reference module; compute
    # its transpose once in the wrapper instead of per grid step.
    wt = jnp.dot(A, B, preferred_element_type=jnp.float32).T.astype(x.dtype)

    m = batch * seq
    x2d = x.reshape(m, rank)

    # Lane-dense packing factor: pack P rows into one 128-lane-wide row.
    pack = 128 // rank if (rank <= 128 and 128 % rank == 0) else 1
    feat = pack * rank  # packed feature width (128 when packing kicks in)

    # Packed-row tiling: TM packed rows per grid step (multiple of 8 sublanes).
    mp = pl.cdiv(m, pack)                       # packed rows needed
    tm = min(tile_m, pl.cdiv(mp, 8) * 8)        # tile height (sublane aligned)
    mp_pad = pl.cdiv(mp, tm) * tm               # padded packed rows
    m_pad = mp_pad * pack                       # padded original rows

    if m_pad != m:
        x2d = jnp.pad(x2d, ((0, m_pad - m), (0, 0)))
    xp = x2d.reshape(mp_pad, feat)              # contiguous reshape (free)

    # Block-diagonal weight: kron(I_P, W^T) -> (feat, feat).  pack == 1 gives
    # back W^T unchanged.
    wblk = jnp.kron(jnp.eye(pack, dtype=wt.dtype), wt)

    grid = (mp_pad // tm,)
    itemsize = jnp.dtype(x.dtype).itemsize
    cost = pl.CostEstimate(
        flops=2 * mp_pad * feat * feat,
        transcendentals=0,
        bytes_accessed=(2 * mp_pad * feat + feat * feat) * itemsize,
    )

    outp = pl.pallas_call(
        _linear_kernel,
        out_shape=jax.ShapeDtypeStruct((mp_pad, feat), x.dtype),
        grid=grid,
        in_specs=[
            pl.BlockSpec((tm, feat), lambda i: (i, 0)),     # streamed x tiles
            pl.BlockSpec((feat, feat), lambda i: (0, 0)),   # resident weight
        ],
        out_specs=pl.BlockSpec((tm, feat), lambda i: (i, 0)),
        compiler_params=pltpu.CompilerParams(
            dimension_semantics=("parallel",),
        ),
        cost_estimate=cost,
    )(xp, wblk)

    out2d = outp.reshape(m_pad, rank)
    if m_pad != m:
        out2d = out2d[:m]
    return out2d.reshape(batch, seq, rank)


if __name__ == "__main__":
    # Small shapes consistent with the module.
    rank, head_dim, n_embd = 32, 64, 128
    batch, seq = 2, 8

    key = jax.random.PRNGKey(0)
    k_a, k_x, k_b = jax.random.split(key, 3)

    # Module-faithful parameters: A ~ randn, B = zeros.
    A = jax.random.normal(k_a, (rank, head_dim), dtype=jnp.float32)
    B = jnp.zeros((head_dim, rank), dtype=jnp.float32)
    # NOTE: self.final_test = nn.Linear(n_embd, head_dim) is defined in the
    # module but never used in forward(), so it is intentionally omitted.

    # Input: feature axis last, size == rank (F.linear(x, matrix) requirement).
    x = jax.random.normal(k_x, (batch, seq, rank), dtype=jnp.float32)

    fwd = jax.jit(lora_forward)

    # 1) Module-faithful check (B = zeros -> output is identically zero).
    out = fwd(x, A, B)
    jax.block_until_ready(out)
    ref = x @ (A @ B).T
    assert out.shape == (batch, seq, rank)
    assert jnp.allclose(out, ref, atol=1e-5, rtol=1e-5)

    # 2) Non-vacuous check: random nonzero B exercises the real matmul path.
    B_nz = jax.random.normal(k_b, (head_dim, rank), dtype=jnp.float32)
    out_nz = fwd(x, A, B_nz)
    jax.block_until_ready(out_nz)
    ref_nz = x @ (A @ B_nz).T
    assert jnp.allclose(out_nz, ref_nz, atol=1e-4, rtol=1e-4)

    # 3) Larger-M path: exercises lane-packing, M-padding and the tiled grid.
    x_big = jax.random.normal(k_x, (4, 300, rank), dtype=jnp.float32)  # m=1200
    out_big = fwd(x_big, A, B_nz)
    jax.block_until_ready(out_big)
    ref_big = x_big @ (A @ B_nz).T
    assert out_big.shape == (4, 300, rank)
    assert jnp.allclose(out_big, ref_big, atol=1e-4, rtol=1e-4)

    # 4) Multi-tile grid path (several grid steps, parallel axis).
    x_huge = jax.random.normal(k_x, (8, 2048, rank), dtype=jnp.float32)  # m=16384
    out_huge = fwd(x_huge, A, B_nz)
    jax.block_until_ready(out_huge)
    ref_huge = x_huge @ (A @ B_nz).T
    assert jnp.allclose(out_huge, ref_huge, atol=1e-3, rtol=1e-3)

    print("KERNEL_OK")
</pallas_src>

<mosaic_0001>
module attributes {stable_mosaic.version = 11 : i64} {
  func.func @_linear_kernel(%arg0: i32, %arg1: memref<8x128xf32, #tpu.memory_space<vmem>>, %arg2: memref<128x128xf32, #tpu.memory_space<vmem>>, %arg3: memref<8x128xf32, #tpu.memory_space<vmem>>) attributes {dimension_semantics = [#tpu.dimension_semantics<parallel>], iteration_bounds = array<i64: 1>, scalar_prefetch = 0 : i64, scratch_operands = 0 : i64, tpu.core_type = #tpu.core_type<tc>, window_params = [{transform_indices = @transform_0, window_bounds = array<i64: 8, 128>}, {pipeline_mode = #tpu.pipeline_mode<synchronous>, transform_indices = @transform_1, window_bounds = array<i64: 128, 128>}, {transform_indices = @transform_2, window_bounds = array<i64: 8, 128>}]} {
    %c0 = arith.constant 0 : index
    %c0_0 = arith.constant 0 : index
    %0 = vector.load %arg1[%c0, %c0_0] : memref<8x128xf32, #tpu.memory_space<vmem>>, vector<8x128xf32>
    %c0_1 = arith.constant 0 : index
    %c0_2 = arith.constant 0 : index
    %1 = vector.load %arg2[%c0_1, %c0_2] : memref<128x128xf32, #tpu.memory_space<vmem>>, vector<128x128xf32>
    %cst = arith.constant dense<0.000000e+00> : vector<8x128xf32>
    %2 = tpu.matmul %0, %1, %cst {dimension_numbers = #tpu.dot_dimension_numbers<[1], [0], [0], [1], [0, 0, 1, 1], [], []>} : vector<8x128xf32>, vector<128x128xf32>, vector<8x128xf32> -> vector<8x128xf32>
    %c0_3 = arith.constant 0 : index
    %c0_4 = arith.constant 0 : index
    %3 = vector.load %arg3[%c0_3, %c0_4] : memref<8x128xf32, #tpu.memory_space<vmem>>, vector<8x128xf32>
    tpu.vector_store %arg3[%c0_3, %c0_4], %2 {strides = array<i32>} : memref<8x128xf32, #tpu.memory_space<vmem>>, vector<8x128xf32>,
    return
  }
  func.func @transform_0(%arg0: i32) -> (i32, i32) {
    %c0_i32 = arith.constant 0 : i32
    %c0_i32_0 = arith.constant 0 : i32
    return %arg0, %c0_i32 : i32, i32
  }
  func.func @transform_1(%arg0: i32) -> (i32, i32) {
    %c0_i32 = arith.constant 0 : i32
    %c0_i32_0 = arith.constant 0 : i32
    %c0_i32_1 = arith.constant 0 : i32
    return %c0_i32, %c0_i32_0 : i32, i32
  }
  func.func @transform_2(%arg0: i32) -> (i32, i32) {
    %c0_i32 = arith.constant 0 : i32
    %c0_i32_0 = arith.constant 0 : i32
    return %arg0, %c0_i32 : i32, i32
  }
}

</mosaic_0001>

<llo_original>
// kernel: lora_forward.1
$region0: #{lora_forward.1}
  #allocation0 [shape = 'u32[]', space=smem, size = 0x4, offset = 0x4, fixed_abs, tag = 'smem constant byte address 0x4 - core index']
  #allocation1 [shape = 'u32[144,128]{1,0:T(1,128)}', space=vmem, size = 0x12000, scoped, tag = 'internal scratch']
  %s0 = inlined_call_operand.vmem [shape: f32[8,128], index: 0, kind: input, shape index: {}]
  %s1 = inlined_call_operand.vmem [shape: f32[128,128], index: 1, kind: input, shape index: {}]
  %s2 = inlined_call_operand.vmem [shape: f32[8,128], index: 2, kind: output, shape index: {}]
  %s3 = sld [smem:[#allocation0]]
  $region18: #{lora_forward.1} parent=0
    _
  %s5 = ssub.s32 1, %s3
  %s6 = scalar_select 0, %s5, %s3
  // Predicated region
  $region2: #{lora_forward.1} parent=0 // pred_check
    _
  $region3: #{lora_forward.1} parent=0 // pred_check_branch
    %8 = sbr.rel (0) target = $region5
  $region4: #{lora_forward.1} parent=0 // pred_region
    _
  $region5: #{lora_forward.1} parent=0 // pred_fallthru
    _
  // Predicated region
  $region6: #{lora_forward.1} parent=0 // pred_check
    _
  $region7: #{lora_forward.1} parent=0 // pred_check_branch
    %10 = sbr.rel (0) target = $region9
  $region8: #{lora_forward.1} parent=0 // pred_region
    _
  $region9: #{lora_forward.1} parent=0 // pred_fallthru
    _
  %v11 = vld [vmem:[%s0] sm:$0xff]
  %v12 = vld [vmem:[%s1] sm:$0xff]
  %v13 = vld [vmem:[%s1 + $0x8] sm:$0xff]
  %v14 = vld [vmem:[%s1 + $0x10] sm:$0xff]
  %v15 = vld [vmem:[%s1 + $0x18] sm:$0xff]
  %v16 = vld [vmem:[%s1 + $0x20] sm:$0xff]
  %v17 = vld [vmem:[%s1 + $0x28] sm:$0xff]
  %v18 = vld [vmem:[%s1 + $0x30] sm:$0xff]
  %v19 = vld [vmem:[%s1 + $0x38] sm:$0xff]
  %v20 = vld [vmem:[%s1 + $0x40] sm:$0xff]
  %v21 = vld [vmem:[%s1 + $0x48] sm:$0xff]
  %v22 = vld [vmem:[%s1 + $0x50] sm:$0xff]
  %v23 = vld [vmem:[%s1 + $0x58] sm:$0xff]
  %v24 = vld [vmem:[%s1 + $0x60] sm:$0xff]
  %v25 = vld [vmem:[%s1 + $0x68] sm:$0xff]
  %v26 = vld [vmem:[%s1 + $0x70] sm:$0xff]
  %v27 = vld [vmem:[%s1 + $0x78] sm:$0xff]
  %28 = vmatprep.subr.mxu0 0.0
  %29 = vmatpush1.msra.mxu0 %v12
  %30 = vmatprep.subr.mxu0 0.0
  %31 = vmatpush1.msra.mxu0 %v13
  %32 = vmatprep.subr.mxu0 0.0
  %33 = vmatpush1.msra.mxu0 %v14
  %34 = vmatprep.subr.mxu0 0.0
  %35 = vmatpush1.msra.mxu0 %v15
  %36 = vmatprep.subr.mxu0 0.0
  %37 = vmatpush1.msra.mxu0 %v16
  %38 = vmatprep.subr.mxu0 0.0
  %39 = vmatpush1.msra.mxu0 %v17
  %40 = vmatprep.subr.mxu0 0.0
  %41 = vmatpush1.msra.mxu0 %v18
  %42 = vmatprep.subr.mxu0 0.0
  %43 = vmatpush1.msra.mxu0 %v19
  %44 = vmatprep.subr.mxu0 0.0
  %45 = vmatpush1.msra.mxu0 %v20
  %46 = vmatprep.subr.mxu0 0.0
  %47 = vmatpush1.msra.mxu0 %v21
  %48 = vmatprep.subr.mxu0 0.0
  %49 = vmatpush1.msra.mxu0 %v22
  %50 = vmatprep.subr.mxu0 0.0
  %51 = vmatpush1.msra.mxu0 %v23
  %52 = vmatprep.subr.mxu0 0.0
  %53 = vmatpush1.msra.mxu0 %v24
  %54 = vmatprep.subr.mxu0 0.0
  %55 = vmatpush1.msra.mxu0 %v25
  %56 = vmatprep.subr.mxu0 0.0
  %57 = vmatpush1.msra.mxu0 %v26
  %58 = vmatprep.subr.mxu0 0.0
  %59 = vmatpush1.msra.mxu0 %v27
  %60 = vmatprep.subr.mxu0 0.0
  %61 = vmatpush1.msra.mxu0 0.0
  %62 = vmatprep.subr.mxu0 0.0
  %63 = vmatpush1.msra.mxu0 0.0
  %64 = vmatprep.subr.mxu0 0.0
  %65 = vmatpush1.msra.mxu0 0.0
  %66 = vmatprep.subr.mxu0 0.0
  %67 = vmatpush1.msra.mxu0 0.0
  %68 = vmatprep.subr.mxu0 0.0
  %69 = vmatpush1.msra.mxu0 0.0
  %70 = vmatprep.subr.mxu0 0.0
  %71 = vmatpush1.msra.mxu0 0.0
  %72 = vmatprep.subr.mxu0 0.0
  %73 = vmatpush1.msra.mxu0 0.0
  %74 = vmatprep.subr.mxu0 0.0
  %75 = vmatpush1.msra.mxu0 0.0
  %76 = vmatprep.subr.mxu0 0.0
  %77 = vmatpush1.msra.mxu0 0.0
  %78 = vmatprep.subr.mxu0 0.0
  %79 = vmatpush1.msra.mxu0 0.0
  %80 = vmatprep.subr.mxu0 0.0
  %81 = vmatpush1.msra.mxu0 0.0
  %82 = vmatprep.subr.mxu0 0.0
  %83 = vmatpush1.msra.mxu0 0.0
  %84 = vmatprep.subr.mxu0 0.0
  %85 = vmatpush1.msra.mxu0 0.0
  %86 = vmatprep.subr.mxu0 0.0
  %87 = vmatpush1.msra.mxu0 0.0
  %88 = vmatprep.subr.mxu0 0.0
  %89 = vmatpush1.msra.mxu0 0.0
  %90 = vmatprep.subr.mxu0 0.0
  %91 = vmatpush1.msra.mxu0 0.0
  %92 = vmatprep.mubr.f32.mxu0 0.0
  %93 = vmatmul.mubr.f32.gmra.mrb[0].mxu0 %v11
  %v94 = vpop.f32.mrb[0].mxu0
  %v95 = vadd.f32 0.0, %v94
  %v96 = vpop.f32.mrb[0].mxu0
  %97 = vdwg.mxu0
  %98 = vst [vmem:[%s2] sm:$0xff] %v95
  // Predicated region
  $region10: #{lora_forward.1} parent=0 // pred_check
    _
  $region11: #{lora_forward.1} parent=0 // pred_check_branch
    %100 = sbr.rel (0) target = $region13
  $region12: #{lora_forward.1} parent=0 // pred_region
    _
  $region13: #{lora_forward.1} parent=0 // pred_fallthru
    _
  // Predicated region
  $region14: #{lora_forward.1} parent=0 // pred_check
    _
  $region15: #{lora_forward.1} parent=0 // pred_check_branch
    %102 = sbr.rel (0) target = $region17
  $region16: #{lora_forward.1} parent=0 // pred_region
    _
  $region17: #{lora_forward.1} parent=0 // pred_fallthru
    _

</llo_original>
